<compile_context>
chip_gen: v7x
topology: tpu7x:2x2x1
jax: 0.10.0
libtpu: 0.0.40
codegen_flags: <defaults>
</compile_context>

<pallas_src>
import functools

import jax
import jax.numpy as jnp
from jax.experimental import pallas as pl
from jax.experimental.pallas import tpu as pltpu


def _round_up(x: int, m: int) -> int:
    return -(-x // m) * m


def _pick_tile(padded: int, pref: int, step: int) -> int:
    """Largest multiple of `step` <= pref that divides `padded` (padded % step == 0)."""
    t = max(step, min(pref, padded))
    t -= t % step
    while padded % t:
        t -= step
    return t


def _gate1_kernel_f32(x_ref, w_ref, b_ref, o_ref):
    """f32 output: accumulate directly in the VMEM-resident output block."""
    k = pl.program_id(2)

    @pl.when(k == 0)
    def _():
        o_ref[...] = jnp.zeros_like(o_ref)

    # Pure MXU accumulate in f32.
    o_ref[...] += jnp.dot(x_ref[...], w_ref[...], preferred_element_type=jnp.float32)

    # Epilogue only on the final K step: bias add + ReLU, in place.
    @pl.when(k == pl.num_programs(2) - 1)
    def _():
        o_ref[...] = jnp.maximum(o_ref[...] + b_ref[...], 0.0)


def _gate1_kernel_acc(x_ref, w_ref, b_ref, o_ref, acc_ref):
    """Low-precision output: keep an f32 scratch accumulator, cast only in epilogue."""
    k = pl.program_id(2)

    @pl.when(k == 0)
    def _():
        acc_ref[...] = jnp.zeros_like(acc_ref)

    acc_ref[...] += jnp.dot(x_ref[...], w_ref[...], preferred_element_type=jnp.float32)

    @pl.when(k == pl.num_programs(2) - 1)
    def _():
        o_ref[...] = jnp.maximum(acc_ref[...] + b_ref[...], 0.0).astype(o_ref.dtype)


@functools.partial(jax.jit, static_argnames=("tm", "tn", "tk", "use_bf16_mxu"))
def gate1_forward(x, w, b, *, tm=256, tn=512, tk=512, use_bf16_mxu=False):
    """y = relu(x @ w + b).

    x: [B, IN], w: [IN, OUT] (transpose of nn.Linear weight), b: [OUT].
    Note: w/b are parameters; on a hot path callers may pre-pad them to the
    128-aligned shapes once — the conditional pads below then become no-ops.
    """
    M, K = x.shape
    K2, N = w.shape
    assert K == K2, "w must be [input_size, output_size] (transpose of nn.Linear weight)"
    assert b.shape == (N,)
    out_dtype = x.dtype

    # ----- tile / pad selection -----------------------------------------
    # M: only sublane (8) granularity; never pad the batch up to a 128/256 tile.
    tm_sel = min(tm, _round_up(M, 8))
    Mp = _round_up(M, tm_sel)

    # K (reduction): single full-dim block when it fits (no activation padding).
    if K <= tk:
        tk_sel, Kp = K, K
    else:
        Kp = _round_up(K, 128)
        tk_sel = _pick_tile(Kp, tk, 128)

    # N: single full-dim block when it fits (no w/b padding, no output slice).
    if N <= tn:
        tn_sel, Np = N, N
    else:
        Np = _round_up(N, 128)
        tn_sel = _pick_tile(Np, tn, 128)

    # ----- operand preparation (zero padding is exact for this op) ------
    mxu_dtype = jnp.bfloat16 if use_bf16_mxu else x.dtype
    xp = x.astype(mxu_dtype)
    wp = w.astype(mxu_dtype)
    if (Mp, Kp) != (M, K):
        xp = jnp.pad(xp, ((0, Mp - M), (0, Kp - K)))
    if (Kp, Np) != (K, N):
        wp = jnp.pad(wp, ((0, Kp - K), (0, Np - N)))
    bp = b.astype(jnp.float32)
    if Np != N:
        bp = jnp.pad(bp, (0, Np - N))
    bp = bp.reshape(1, Np)

    n_i, n_j, n_k = Mp // tm_sel, Np // tn_sel, Kp // tk_sel
    grid = (n_i, n_j, n_k)

    in_itemsize = jnp.dtype(mxu_dtype).itemsize
    out_itemsize = jnp.dtype(out_dtype).itemsize
    cost = pl.CostEstimate(
        flops=2 * Mp * Kp * Np,
        transcendentals=0,
        # Account for grid reuse: x re-read per N tile, w re-read per M tile.
        bytes_accessed=(Mp * Kp * n_j + Kp * Np * n_i) * in_itemsize
        + Np * 4 * n_i
        + Mp * Np * out_itemsize,
    )

    if out_dtype == jnp.float32:
        kernel = _gate1_kernel_f32
        scratch_shapes = []
    else:
        kernel = _gate1_kernel_acc
        scratch_shapes = [pltpu.VMEM((tm_sel, tn_sel), jnp.float32)]

    # Double-buffered working-set estimate; keep the scoped-VMEM limit above it
    # (v5e default is only 16 MiB) but never above v7x's 64 MiB physical VMEM.
    vmem_est = (
        2 * (tm_sel * tk_sel + tk_sel * tn_sel) * in_itemsize
        + 2 * tm_sel * tn_sel * out_itemsize
        + 2 * tn_sel * 4
        + (tm_sel * tn_sel * 4 if scratch_shapes else 0)
    )
    vmem_limit = min(64 << 20, max(32 << 20, int(1.5 * vmem_est)))

    yp = pl.pallas_call(
        kernel,
        out_shape=jax.ShapeDtypeStruct((Mp, Np), out_dtype),
        grid_spec=pltpu.PrefetchScalarGridSpec(
            num_scalar_prefetch=0,
            grid=grid,
            in_specs=[
                pl.BlockSpec((tm_sel, tk_sel), lambda i, j, k: (i, k)),   # x tile
                pl.BlockSpec((tk_sel, tn_sel), lambda i, j, k: (k, j)),   # w tile
                pl.BlockSpec((1, tn_sel), lambda i, j, k: (0, j)),        # bias per N tile
            ],
            out_specs=pl.BlockSpec((tm_sel, tn_sel), lambda i, j, k: (i, j)),
            scratch_shapes=scratch_shapes,
        ),
        compiler_params=pltpu.CompilerParams(
            dimension_semantics=("parallel", "parallel", "arbitrary"),
            vmem_limit_bytes=vmem_limit,
        ),
        cost_estimate=cost,
    )(xp, wp, bp)

    if (Mp, Np) != (M, N):
        yp = yp[:M, :N]
    return yp


if __name__ == "__main__":
    # Small shapes consistent with the module: batch=8, input_size=32, output_size=64.
    batch, input_size, output_size = 8, 32, 64

    key = jax.random.PRNGKey(0)
    kx, kw, kb = jax.random.split(key, 3)

    x = jax.random.normal(kx, (batch, input_size), dtype=jnp.float32)
    # Mimic nn.Linear's uniform(-1/sqrt(in), 1/sqrt(in)) init; w stored as [IN, OUT].
    bound = 1.0 / (input_size ** 0.5)
    w = jax.random.uniform(kw, (input_size, output_size),
                           minval=-bound, maxval=bound, dtype=jnp.float32)
    b = jax.random.uniform(kb, (output_size,),
                           minval=-bound, maxval=bound, dtype=jnp.float32)

    # Tiny spec case: no padding, no slicing, grid=(1,1,1) with tm=8, tk=32, tn=64.
    y = gate1_forward(x, w, b)
    jax.block_until_ready(y)
    y_ref = jnp.maximum(x @ w + b, 0.0)
    assert y.shape == (batch, output_size)
    assert jnp.allclose(y, y_ref, atol=1e-5, rtol=1e-5)

    # Also exercise the tiled path (multi-step M/N/K grid, padding + epilogue slice).
    k2x, k2w, k2b = jax.random.split(jax.random.PRNGKey(1), 3)
    M2, K2, N2 = 384, 1024, 640
    x2 = jax.random.normal(k2x, (M2, K2), dtype=jnp.float32)
    w2 = jax.random.normal(k2w, (K2, N2), dtype=jnp.float32) * (1.0 / (K2 ** 0.5))
    b2 = jax.random.normal(k2b, (N2,), dtype=jnp.float32) * 0.1
    y2 = gate1_forward(x2, w2, b2)
    jax.block_until_ready(y2)
    y2_ref = jnp.maximum(x2 @ w2 + b2, 0.0)
    assert y2.shape == (M2, N2)
    # Default TPU matmul precision is bf16-class; use a matching tolerance here.
    assert jnp.allclose(y2, y2_ref, atol=1e-2, rtol=1e-2)

    print("KERNEL_OK")
</pallas_src>

<mosaic_0001>
module attributes {stable_mosaic.version = 11 : i64} {
  func.func @_gate1_kernel_f32(%arg0: i32, %arg1: i32, %arg2: i32, %arg3: memref<8x32xf32, #tpu.memory_space<vmem>>, %arg4: memref<32x64xf32, #tpu.memory_space<vmem>>, %arg5: memref<1x64xf32, #tpu.memory_space<vmem>>, %arg6: memref<8x64xf32, #tpu.memory_space<vmem>>) attributes {dimension_semantics = [#tpu.dimension_semantics<parallel>, #tpu.dimension_semantics<parallel>, #tpu.dimension_semantics<arbitrary>], iteration_bounds = array<i64: 1, 1, 1>, scalar_prefetch = 0 : i64, scratch_operands = 0 : i64, tpu.core_type = #tpu.core_type<tc>, window_params = [{transform_indices = @transform_0, window_bounds = array<i64: 8, 32>}, {transform_indices = @transform_1, window_bounds = array<i64: 32, 64>}, {transform_indices = @transform_2, window_bounds = array<i64: 1, 64>}, {transform_indices = @transform_3, window_bounds = array<i64: 8, 64>}]} {
    %c0_i32 = arith.constant 0 : i32
    %0 = arith.cmpi eq, %arg2, %c0_i32 : i32
    %1 = arith.extui %0 : i1 to i32
    %c0_i32_0 = arith.constant 0 : i32
    %2 = arith.cmpi ne, %1, %c0_i32_0 : i32
    scf.if %2 {
      %cst_10 = arith.constant 0.000000e+00 : f32
      %12 = vector.broadcast %cst_10 : f32 to vector<8x64xf32>
      %c0_11 = arith.constant 0 : index
      %c0_12 = arith.constant 0 : index
      %13 = vector.load %arg6[%c0_11, %c0_12] : memref<8x64xf32, #tpu.memory_space<vmem>>, vector<8x64xf32>
      tpu.vector_store %arg6[%c0_11, %c0_12], %12 {strides = array<i32>} : memref<8x64xf32, #tpu.memory_space<vmem>>, vector<8x64xf32>,
    } else {
    }
    %c0 = arith.constant 0 : index
    %c0_1 = arith.constant 0 : index
    %3 = vector.load %arg6[%c0, %c0_1] : memref<8x64xf32, #tpu.memory_space<vmem>>, vector<8x64xf32>
    %c0_2 = arith.constant 0 : index
    %c0_3 = arith.constant 0 : index
    %4 = vector.load %arg3[%c0_2, %c0_3] : memref<8x32xf32, #tpu.memory_space<vmem>>, vector<8x32xf32>
    %c0_4 = arith.constant 0 : index
    %c0_5 = arith.constant 0 : index
    %5 = vector.load %arg4[%c0_4, %c0_5] : memref<32x64xf32, #tpu.memory_space<vmem>>, vector<32x64xf32>
    %cst = arith.constant dense<0.000000e+00> : vector<8x64xf32>
    %6 = tpu.matmul %4, %5, %cst {dimension_numbers = #tpu.dot_dimension_numbers<[1], [0], [0], [1], [0, 0, 1, 1], [], []>} : vector<8x32xf32>, vector<32x64xf32>, vector<8x64xf32> -> vector<8x64xf32>
    %7 = arith.addf %3, %6 : vector<8x64xf32>
    %c0_6 = arith.constant 0 : index
    %c0_7 = arith.constant 0 : index
    %8 = vector.load %arg6[%c0_6, %c0_7] : memref<8x64xf32, #tpu.memory_space<vmem>>, vector<8x64xf32>
    tpu.vector_store %arg6[%c0_6, %c0_7], %7 {strides = array<i32>} : memref<8x64xf32, #tpu.memory_space<vmem>>, vector<8x64xf32>,
    %c0_i32_8 = arith.constant 0 : i32
    %9 = arith.cmpi eq, %arg2, %c0_i32_8 : i32
    %10 = arith.extui %9 : i1 to i32
    %c0_i32_9 = arith.constant 0 : i32
    %11 = arith.cmpi ne, %10, %c0_i32_9 : i32
    scf.if %11 {
      %c0_10 = arith.constant 0 : index
      %c0_11 = arith.constant 0 : index
      %12 = vector.load %arg6[%c0_10, %c0_11] : memref<8x64xf32, #tpu.memory_space<vmem>>, vector<8x64xf32>
      %c0_12 = arith.constant 0 : index
      %c0_13 = arith.constant 0 : index
      %13 = vector.load %arg5[%c0_12, %c0_13] : memref<1x64xf32, #tpu.memory_space<vmem>>, vector<1x64xf32>
      %14 = vector.broadcast %13 : vector<1x64xf32> to vector<8x64xf32>
      %15 = arith.addf %12, %14 : vector<8x64xf32>
      %cst_14 = arith.constant 0.000000e+00 : f32
      %16 = vector.broadcast %cst_14 : f32 to vector<8x64xf32>
      %17 = arith.maximumf %15, %16 : vector<8x64xf32>
      %c0_15 = arith.constant 0 : index
      %c0_16 = arith.constant 0 : index
      %18 = vector.load %arg6[%c0_15, %c0_16] : memref<8x64xf32, #tpu.memory_space<vmem>>, vector<8x64xf32>
      tpu.vector_store %arg6[%c0_15, %c0_16], %17 {strides = array<i32>} : memref<8x64xf32, #tpu.memory_space<vmem>>, vector<8x64xf32>,
    } else {
    }
    return
  }
  func.func @transform_0(%arg0: i32, %arg1: i32, %arg2: i32) -> (i32, i32) {
    %c0_i32 = arith.constant 0 : i32
    return %arg0, %arg2 : i32, i32
  }
  func.func @transform_1(%arg0: i32, %arg1: i32, %arg2: i32) -> (i32, i32) {
    %c0_i32 = arith.constant 0 : i32
    return %arg2, %arg1 : i32, i32
  }
  func.func @transform_2(%arg0: i32, %arg1: i32, %arg2: i32) -> (i32, i32) {
    %c0_i32 = arith.constant 0 : i32
    %c0_i32_0 = arith.constant 0 : i32
    return %c0_i32, %arg1 : i32, i32
  }
  func.func @transform_3(%arg0: i32, %arg1: i32, %arg2: i32) -> (i32, i32) {
    %c0_i32 = arith.constant 0 : i32
    return %arg0, %arg1 : i32, i32
  }
}

</mosaic_0001>

<llo_original>
// kernel: gate1_forward.1
$region0: #{gate1_forward.1}
  #allocation0 [shape = 'u32[]', space=smem, size = 0x4, offset = 0x4, fixed_abs, tag = 'smem constant byte address 0x4 - core index']
  #allocation1 [shape = 'u32[144,128]{1,0:T(1,128)}', space=vmem, size = 0x12000, scoped, tag = 'internal scratch']
  %s0 = inlined_call_operand.hbm [shape: f32[8,32], index: 0, kind: input, shape index: {}]
  %s1 = inlined_call_operand.hbm [shape: f32[32,64], index: 1, kind: input, shape index: {}]
  %s2 = inlined_call_operand.vmem [shape: f32[1,64], index: 2, kind: input, shape index: {}]
  %s3 = inlined_call_operand.hbm [shape: f32[8,64], index: 3, kind: output, shape index: {}]
  %s4 = sld [smem:[#allocation0]]
  $region38: #{gate1_forward.1} parent=0
    _
  %s6 = ssub.s32 1, %s4
  %s7 = scalar_select 0, %s6, %s4
  $region1: #{gate1_forward.1} parent=0
    #allocation2 [shape = 'u8[4096]{0}', space=vmem, size = 0x1000, scoped, tag = 'input window, operand 0, single buffered']
    #allocation3 [shape = 's32[1]{0}', space=sflag, size = 0x4, scoped, tag = 'scoped memory for gate1_forward.1']
    #allocation4 [shape = 's32[1]{0}', space=sflag, size = 0x4, scoped, tag = 'scoped memory for gate1_forward.1']
    #allocation5 [shape = 'u8[16384]{0}', space=vmem, size = 0x4000, scoped, tag = 'input window, operand 1, single buffered']
    #allocation6 [shape = 's32[1]{0}', space=sflag, size = 0x4, scoped, tag = 'scoped memory for gate1_forward.1']
    #allocation7 [shape = 'u8[4096]{0}', space=vmem, size = 0x1000, scoped, tag = 'output window, operand 0, single buffered']
    %8 = vsyncpa [#allocation3], 0
    %9 = vsyncpa [#allocation6], 0
    %10 = vsyncpa [#allocation4], 0
    // Predicated region
    $region2: #{gate1_forward.1} parent=1 // pred_check
      _
    $region3: #{gate1_forward.1} parent=1 // pred_check_branch
      %12 = sbr.rel (0) target = $region5
    $region4: #{gate1_forward.1} parent=1 // pred_region
      %s14 = ssub.s32 128, 128
      %15 = vsyncadd [#allocation3], %s14
      %s17 = sshll.u32 [#allocation2], 4
      %s18 = int_to_ptr.vmem [resolvable:$true] %s17
      %20 = dma.hbm_to_vmem [thread:$0]  %s0, 128, %s18, [#allocation3]
    $region5: #{gate1_forward.1} parent=1 // pred_fallthru
      _
    // Predicated region
    $region6: #{gate1_forward.1} parent=1 // pred_check
      _
    $region7: #{gate1_forward.1} parent=1 // pred_check_branch
      %22 = sbr.rel (0) target = $region9
    $region8: #{gate1_forward.1} parent=1 // pred_region
      %s24 = ssub.s32 512, 512
      %25 = vsyncadd [#allocation6], %s24
      %s26 = sshll.u32 [#allocation5], 4
      %s27 = int_to_ptr.vmem [resolvable:$true] %s26
      %32 = dma.hbm_to_vmem [thread:$0]  %s1, 512, %s27, [#allocation6], 128, 128, 8
    $region9: #{gate1_forward.1} parent=1 // pred_fallthru
      _
    // Predicated region
    $region10: #{gate1_forward.1} parent=1 // pred_check
      _
    $region11: #{gate1_forward.1} parent=1 // pred_check_branch
      %34 = sbr.rel (0) target = $region13
    $region12: #{gate1_forward.1} parent=1 // pred_region
      _
    $region13: #{gate1_forward.1} parent=1 // pred_fallthru
      _
    // Predicated region
    $region14: #{gate1_forward.1} parent=1 // pred_check
      _
    $region15: #{gate1_forward.1} parent=1 // pred_check_branch
      %36 = sbr.rel (0) target = $region17
    $region16: #{gate1_forward.1} parent=1 // pred_region
      %37 = dma.done [#allocation3], 128
    $region17: #{gate1_forward.1} parent=1 // pred_fallthru
      _
    // Predicated region
    $region18: #{gate1_forward.1} parent=1 // pred_check
      _
    $region19: #{gate1_forward.1} parent=1 // pred_check_branch
      %39 = sbr.rel (0) target = $region21
    $region20: #{gate1_forward.1} parent=1 // pred_region
      %40 = dma.done [#allocation6], 512
    $region21: #{gate1_forward.1} parent=1 // pred_fallthru
      _
    %p41 = scmp.eq.s32.totalorder 0, 0
    // Predicated region
    $region22: #{gate1_forward.1} parent=1 // pred_check
      %p42 = pneg %p41
    $region23: #{gate1_forward.1} parent=1 // pred_check_branch
      %44 = sbr.rel (%p42) target = $region25
    $region24: #{gate1_forward.1} parent=1 // pred_region
      %vm45 = vcmask 523264
      %46 = vst.msk [vmem:[#allocation7] sm:$0xff] %vm45, 0.0
    $region25: #{gate1_forward.1} parent=1 // pred_fallthru
      _
    %v47 = vld [vmem:[#allocation7] sm:$0xff]
    %v48 = vld [vmem:[#allocation2] sm:$0xff]
    %v49 = vld [vmem:[#allocation5] sm:$0xff]
    %v50 = vld [vmem:[#allocation5 + $0x8] sm:$0xff]
    %v51 = vld [vmem:[#allocation5 + $0x10] sm:$0xff]
    %v52 = vld [vmem:[#allocation5 + $0x18] sm:$0xff]
    %vm53 = vcmask 261120
    %v55 = vsel %vm53, %v48, 0
    %57 = vmatprep.subr.mxu0 0.0
    %58 = vmatpush1.msra.mxu0 %v49
    %59 = vmatprep.subr.mxu0 0.0
    %60 = vmatpush1.msra.mxu0 %v50
    %61 = vmatprep.subr.mxu0 0.0
    %62 = vmatpush1.msra.mxu0 %v51
    %63 = vmatprep.subr.mxu0 0.0
    %64 = vmatpush1.msra.mxu0 %v52
    %65 = vmatprep.subr.mxu0 0.0
    %66 = vmatpush1.msra.mxu0 0.0
    %67 = vmatprep.subr.mxu0 0.0
    %68 = vmatpush1.msra.mxu0 0.0
    %69 = vmatprep.subr.mxu0 0.0
    %70 = vmatpush1.msra.mxu0 0.0
    %71 = vmatprep.subr.mxu0 0.0
    %72 = vmatpush1.msra.mxu0 0.0
    %73 = vmatprep.subr.mxu0 0.0
    %74 = vmatpush1.msra.mxu0 0.0
    %75 = vmatprep.subr.mxu0 0.0
    %76 = vmatpush1.msra.mxu0 0.0
    %77 = vmatprep.subr.mxu0 0.0
    %78 = vmatpush1.msra.mxu0 0.0
    %79 = vmatprep.subr.mxu0 0.0
    %80 = vmatpush1.msra.mxu0 0.0
    %81 = vmatprep.subr.mxu0 0.0
    %82 = vmatpush1.msra.mxu0 0.0
    %83 = vmatprep.subr.mxu0 0.0
    %84 = vmatpush1.msra.mxu0 0.0
    %85 = vmatprep.subr.mxu0 0.0
    %86 = vmatpush1.msra.mxu0 0.0
    %87 = vmatprep.subr.mxu0 0.0
    %88 = vmatpush1.msra.mxu0 0.0
    %89 = vmatprep.subr.mxu0 0.0
    %90 = vmatpush1.msra.mxu0 0.0
    %91 = vmatprep.subr.mxu0 0.0
    %92 = vmatpush1.msra.mxu0 0.0
    %93 = vmatprep.subr.mxu0 0.0
    %94 = vmatpush1.msra.mxu0 0.0
    %95 = vmatprep.subr.mxu0 0.0
    %96 = vmatpush1.msra.mxu0 0.0
    %97 = vmatprep.subr.mxu0 0.0
    %98 = vmatpush1.msra.mxu0 0.0
    %99 = vmatprep.subr.mxu0 0.0
    %100 = vmatpush1.msra.mxu0 0.0
    %101 = vmatprep.subr.mxu0 0.0
    %102 = vmatpush1.msra.mxu0 0.0
    %103 = vmatprep.subr.mxu0 0.0
    %104 = vmatpush1.msra.mxu0 0.0
    %105 = vmatprep.subr.mxu0 0.0
    %106 = vmatpush1.msra.mxu0 0.0
    %107 = vmatprep.subr.mxu0 0.0
    %108 = vmatpush1.msra.mxu0 0.0
    %109 = vmatprep.subr.mxu0 0.0
    %110 = vmatpush1.msra.mxu0 0.0
    %111 = vmatprep.subr.mxu0 0.0
    %112 = vmatpush1.msra.mxu0 0.0
    %113 = vmatprep.subr.mxu0 0.0
    %114 = vmatpush1.msra.mxu0 0.0
    %115 = vmatprep.subr.mxu0 0.0
    %116 = vmatpush1.msra.mxu0 0.0
    %117 = vmatprep.subr.mxu0 0.0
    %118 = vmatpush1.msra.mxu0 0.0
    %119 = vmatprep.subr.mxu0 0.0
    %120 = vmatpush1.msra.mxu0 0.0
    %121 = vmatprep.mubr.f32.mxu0 0.0
    %122 = vmatmul.mubr.f32.gmra.mrb[0].mxu0 %v55
    %v123 = vpop.f32.mrb[0].mxu0
    %v124 = vadd.f32 0.0, %v123
    %v125 = vpop.f32.mrb[0].mxu0
    %126 = vdwg.mxu0
    %v127 = vadd.f32 %v47, %v124
    %vm128 = vcmask 523264
    %129 = vst.msk [vmem:[#allocation7] sm:$0xff] %vm128, %v127
    // Predicated region
    $region26: #{gate1_forward.1} parent=1 // pred_check
      %p130 = pneg %p41
    $region27: #{gate1_forward.1} parent=1 // pred_check_branch
      %132 = sbr.rel (%p130) target = $region29
    $region28: #{gate1_forward.1} parent=1 // pred_region
      %v133 = vld [vmem:[#allocation7] sm:$0xff]
      %v134 = vld [vmem:[%s2] sm:$0x1]
      %v136 = vlaneseq
      %v137 = vshrl.u32 %v136, 7
      %v138 = vsub.s32 0, %v137
      %v139 = vrot.slane %v134, %v138
      %v141 = vadd.f32 %v133, %v139
      %v142 = vmax.f32 %v141, 0.0
      %143 = vst.msk [vmem:[#allocation7] sm:$0xff] %vm128, %v142
    $region29: #{gate1_forward.1} parent=1 // pred_fallthru
      _
    // Predicated region
    $region30: #{gate1_forward.1} parent=1 // pred_check
      _
    $region31: #{gate1_forward.1} parent=1 // pred_check_branch
      %145 = sbr.rel (0) target = $region33
    $region32: #{gate1_forward.1} parent=1 // pred_region
      %s147 = ssub.s32 128, 128
      %148 = vsyncadd [#allocation4], %s147
      %s150 = sshll.u32 [#allocation7], 4
      %s151 = int_to_ptr.vmem [resolvable:$true] %s150
      %153 = dma.vmem_to_hbm [thread:$0]  %s151, 128, %s3, [#allocation4]
    $region33: #{gate1_forward.1} parent=1 // pred_fallthru
      _
    // Predicated region
    $region34: #{gate1_forward.1} parent=1 // pred_check
      _
    $region35: #{gate1_forward.1} parent=1 // pred_check_branch
      %155 = sbr.rel (0) target = $region37
    $region36: #{gate1_forward.1} parent=1 // pred_region
      %156 = dma.done [#allocation4], 128
    $region37: #{gate1_forward.1} parent=1 // pred_fallthru
      _
    %157 = vsyncpa [#allocation3], 1
    %158 = vsyncpa [#allocation6], 1
    %159 = vsyncpa [#allocation4], 1

</llo_original>
